<compile_context>
chip_gen: v7x
topology: tpu7x:2x2x1
jax: 0.10.0
libtpu: 0.0.40
codegen_flags: <defaults>
</compile_context>

<pallas_src>
import functools

import jax
import jax.numpy as jnp
from jax import lax
from jax.experimental import pallas as pl
from jax.experimental.pallas import tpu as pltpu

_LANE = 128


def _round_up(x, m):
    return (x + m - 1) // m * m


def _plain_kernel(x_ref, gamma_ref, beta_ref, o_ref, *, eps):
    """hidden lives directly on the lane axis (no folding)."""
    x = x_ref[...].astype(jnp.float32)                     # (tile, hidden)
    u = jnp.mean(x, axis=-1, keepdims=True)
    xc = x - u
    s = jnp.mean(xc * xc, axis=-1, keepdims=True)          # biased variance
    y = xc * lax.rsqrt(s + eps)
    g = gamma_ref[...].astype(jnp.float32)                  # (1, hidden)
    b = beta_ref[...].astype(jnp.float32)
    o_ref[...] = (g * y + b).astype(o_ref.dtype)


def _folded_kernel(x_ref, gamma_ref, beta_ref, gid_ref, o_ref, *, eps, groups,
                   hidden):
    """`groups` independent rows folded onto the 128-lane axis (hidden < 128).

    Per-row statistics are computed with full-width masked reductions (mask is
    a per-lane group-id predicate), so every op is a full lane-dense vector op
    with no sub-vreg slices or lane-axis concatenations.
    """
    x = x_ref[...].astype(jnp.float32)                      # (tile, groups*hidden)
    gid = gid_ref[...]                                       # (1, groups*hidden) f32
    inv_h = jnp.float32(1.0 / hidden)
    masks = [(gid == jnp.float32(k)).astype(jnp.float32) for k in range(groups)]

    u = jnp.zeros_like(x)
    for mk in masks:                                         # static, small loop
        sk = jnp.sum(x * mk, axis=-1, keepdims=True)         # (tile, 1)
        u = u + (sk * inv_h) * mk                            # broadcast back

    xc = x - u
    sq = xc * xc
    s = jnp.zeros_like(x)
    for mk in masks:
        vk = jnp.sum(sq * mk, axis=-1, keepdims=True)
        s = s + (vk * inv_h) * mk

    y = xc * lax.rsqrt(s + eps)
    g = gamma_ref[...].astype(jnp.float32)                   # pre-tiled (1, lw)
    b = beta_ref[...].astype(jnp.float32)
    o_ref[...] = (g * y + b).astype(o_ref.dtype)


def layer_norm(x, gamma, beta, *, eps=1e-12):
    """LayerNorm over the last axis of x (any rank >= 1)."""
    orig_shape = x.shape
    hidden = int(orig_shape[-1])
    rows = 1
    for d in orig_shape[:-1]:
        rows *= int(d)
    rows = max(rows, 1)

    dtype = x.dtype
    dtype_bytes = jnp.dtype(dtype).itemsize
    sub = max(8, 32 // dtype_bytes)          # sublane multiple: 8/16/32 per dtype

    # ---- fold rows onto the lane axis when hidden is narrow -----------------
    # Only via free (contiguous) reshapes; if the group count doesn't divide
    # the row count, fall back to smaller power-of-two groups (or none).
    groups = 1
    if 0 < hidden < _LANE and _LANE % hidden == 0:
        g = _LANE // hidden
        while g > 1 and rows % g != 0:
            g //= 2
        groups = g
    lane_width = groups * hidden
    view_rows = rows // groups

    # ---- VMEM budget & row tile ---------------------------------------------
    try:
        vmem_cap = int(pltpu.get_tpu_info().vmem_capacity_bytes)
    except Exception:
        vmem_cap = 64 * 1024 * 1024          # conservative (v7x-sized) fallback
    # >=16 MiB headroom for compiler scratch; never request more than 48 MiB.
    vmem_budget = max(16 << 20, min(vmem_cap - (16 << 20), 48 << 20))

    # Per-row VMEM: double-buffered in + out in the native dtype, plus the f32
    # working set the kernel keeps live (x, u, xc, sq, s, y ~ 6 arrays).
    bytes_per_row = 4 * lane_width * dtype_bytes + 24 * lane_width
    tile_cap = vmem_budget // bytes_per_row
    tile_cap = max(sub, (tile_cap // sub) * sub)
    tile_cap = min(tile_cap, 1024)

    if view_rows > tile_cap:
        tile = tile_cap
    elif view_rows >= 2 * sub:
        # Split into >=2 grid steps so the "parallel" axis can shard across
        # both TensorCores on megacore parts (v7x).
        tile = _round_up(pl.cdiv(view_rows, 2), sub)
    else:
        tile = view_rows                      # full first dim (tiny problem)
    grid_steps = pl.cdiv(view_rows, tile)     # ragged tail handled by Pallas

    # ---- 2-D (folded) views: pure reshapes, no pad, no extra HBM traffic ----
    x2 = x.reshape(view_rows, lane_width)
    gamma2 = jnp.tile(gamma.reshape(-1), groups).reshape(1, lane_width)
    beta2 = jnp.tile(beta.reshape(-1), groups).reshape(1, lane_width)

    row_spec = pl.BlockSpec((tile, lane_width), lambda i: (i, 0))
    vec_spec = pl.BlockSpec((1, lane_width), lambda i: (0, 0))

    if groups == 1:
        kernel = functools.partial(_plain_kernel, eps=eps)
        inputs = (x2, gamma2, beta2)
        in_specs = [row_spec, vec_spec, vec_spec]
    else:
        kernel = functools.partial(_folded_kernel, eps=eps, groups=groups,
                                   hidden=hidden)
        gid = jnp.repeat(jnp.arange(groups, dtype=jnp.float32),
                         hidden).reshape(1, lane_width)
        inputs = (x2, gamma2, beta2, gid)
        in_specs = [row_spec, vec_spec, vec_spec, vec_spec]

    param_bytes = (int(gamma2.size) * jnp.dtype(gamma2.dtype).itemsize
                   + int(beta2.size) * jnp.dtype(beta2.dtype).itemsize)
    cost = pl.CostEstimate(
        flops=8 * rows * hidden,
        transcendentals=rows,
        bytes_accessed=2 * rows * hidden * dtype_bytes + param_bytes,
    )

    out = pl.pallas_call(
        kernel,
        out_shape=jax.ShapeDtypeStruct((view_rows, lane_width), dtype),
        grid_spec=pltpu.PrefetchScalarGridSpec(
            num_scalar_prefetch=0,
            grid=(grid_steps,),
            in_specs=in_specs,
            out_specs=row_spec,
        ),
        compiler_params=pltpu.CompilerParams(
            dimension_semantics=("parallel",),
            vmem_limit_bytes=int(vmem_budget),
        ),
        cost_estimate=cost,
    )(*inputs)

    return out.reshape(orig_shape)


def _reference(x, gamma, beta, eps):
    u = jnp.mean(x, axis=-1, keepdims=True)
    s = jnp.mean((x - u) ** 2, axis=-1, keepdims=True)
    return gamma * ((x - u) / jnp.sqrt(s + eps)) + beta


if __name__ == "__main__":
    key = jax.random.PRNGKey(0)

    # Shapes implied by the module's usage: normalize over the hidden (-1) axis.
    batch, seq, hidden = 2, 8, 32
    x = jax.random.normal(key, (batch, seq, hidden), dtype=jnp.float32)
    gamma = jnp.ones((hidden,), dtype=jnp.float32)   # nn.Parameter(torch.ones)
    beta = jnp.zeros((hidden,), dtype=jnp.float32)   # nn.Parameter(torch.zeros)

    y = jax.block_until_ready(layer_norm(x, gamma, beta, eps=1e-12))
    ref = _reference(x, gamma, beta, 1e-12)
    assert jnp.allclose(y, ref, atol=1e-5, rtol=1e-5), "mismatch (folded path)"

    # Lane-native path with a ragged row tail (hidden multiple of 128).
    hidden2 = 128
    x2 = jax.random.normal(jax.random.PRNGKey(1), (4, 6, hidden2),
                           dtype=jnp.float32)
    gamma2 = jnp.ones((hidden2,), dtype=jnp.float32)
    beta2 = jnp.zeros((hidden2,), dtype=jnp.float32)
    y2 = jax.block_until_ready(layer_norm(x2, gamma2, beta2, eps=1e-12))
    ref2 = _reference(x2, gamma2, beta2, 1e-12)
    assert jnp.allclose(y2, ref2, atol=1e-5, rtol=1e-5), "mismatch (plain path)"

    # Narrow hidden with a row count that prevents folding (fallback path).
    x3 = jax.random.normal(jax.random.PRNGKey(2), (3, 5, hidden),
                           dtype=jnp.float32)
    y3 = jax.block_until_ready(layer_norm(x3, gamma, beta, eps=1e-12))
    ref3 = _reference(x3, gamma, beta, 1e-12)
    assert jnp.allclose(y3, ref3, atol=1e-5, rtol=1e-5), "mismatch (fallback)"

    print("KERNEL_OK")
</pallas_src>

<mosaic_0001>
module attributes {stable_mosaic.version = 11 : i64} {
  func.func @_folded_kernel(%arg0: i32, %arg1: memref<4x128xf32, #tpu.memory_space<vmem>>, %arg2: memref<1x128xf32, #tpu.memory_space<vmem>>, %arg3: memref<1x128xf32, #tpu.memory_space<vmem>>, %arg4: memref<1x128xf32, #tpu.memory_space<vmem>>, %arg5: memref<4x128xf32, #tpu.memory_space<vmem>>) attributes {dimension_semantics = [#tpu.dimension_semantics<parallel>], iteration_bounds = array<i64: 1>, scalar_prefetch = 0 : i64, scratch_operands = 0 : i64, tpu.core_type = #tpu.core_type<tc>, window_params = [{transform_indices = @transform_0, window_bounds = array<i64: 4, 128>}, {pipeline_mode = #tpu.pipeline_mode<synchronous>, transform_indices = @transform_1, window_bounds = array<i64: 1, 128>}, {pipeline_mode = #tpu.pipeline_mode<synchronous>, transform_indices = @transform_2, window_bounds = array<i64: 1, 128>}, {pipeline_mode = #tpu.pipeline_mode<synchronous>, transform_indices = @transform_3, window_bounds = array<i64: 1, 128>}, {transform_indices = @transform_4, window_bounds = array<i64: 4, 128>}]} {
    %c0 = arith.constant 0 : index
    %c0_0 = arith.constant 0 : index
    %0 = vector.load %arg1[%c0, %c0_0] : memref<4x128xf32, #tpu.memory_space<vmem>>, vector<4x128xf32>
    %c0_1 = arith.constant 0 : index
    %c0_2 = arith.constant 0 : index
    %1 = vector.load %arg4[%c0_1, %c0_2] : memref<1x128xf32, #tpu.memory_space<vmem>>, vector<1x128xf32>
    %cst = arith.constant 0.000000e+00 : f32
    %2 = vector.broadcast %cst : f32 to vector<1x128xf32>
    %3 = arith.cmpf oeq, %1, %2 : vector<1x128xf32>
    %4 = arith.extui %3 : vector<1x128xi1> to vector<1x128xi32>
    %5 = arith.sitofp %4 : vector<1x128xi32> to vector<1x128xf32>
    %cst_3 = arith.constant 1.000000e+00 : f32
    %6 = vector.broadcast %cst_3 : f32 to vector<1x128xf32>
    %7 = arith.cmpf oeq, %1, %6 : vector<1x128xf32>
    %8 = arith.extui %7 : vector<1x128xi1> to vector<1x128xi32>
    %9 = arith.sitofp %8 : vector<1x128xi32> to vector<1x128xf32>
    %cst_4 = arith.constant 2.000000e+00 : f32
    %10 = vector.broadcast %cst_4 : f32 to vector<1x128xf32>
    %11 = arith.cmpf oeq, %1, %10 : vector<1x128xf32>
    %12 = arith.extui %11 : vector<1x128xi1> to vector<1x128xi32>
    %13 = arith.sitofp %12 : vector<1x128xi32> to vector<1x128xf32>
    %cst_5 = arith.constant 3.000000e+00 : f32
    %14 = vector.broadcast %cst_5 : f32 to vector<1x128xf32>
    %15 = arith.cmpf oeq, %1, %14 : vector<1x128xf32>
    %16 = arith.extui %15 : vector<1x128xi1> to vector<1x128xi32>
    %17 = arith.sitofp %16 : vector<1x128xi32> to vector<1x128xf32>
    %cst_6 = arith.constant 0.000000e+00 : f32
    %18 = vector.broadcast %cst_6 : f32 to vector<4x128xf32>
    %19 = vector.broadcast %5 : vector<1x128xf32> to vector<4x128xf32>
    %20 = arith.mulf %0, %19 : vector<4x128xf32>
    %cst_7 = arith.constant dense<0.000000e+00> : vector<4xf32>
    %21 = vector.multi_reduction <add>, %20, %cst_7 [1] : vector<4x128xf32> to vector<4xf32>
    %22 = vector.shape_cast %21 : vector<4xf32> to vector<4x1xf32>
    %cst_8 = arith.constant 3.125000e-02 : f32
    %23 = vector.broadcast %cst_8 : f32 to vector<4x1xf32>
    %24 = arith.mulf %22, %23 : vector<4x1xf32>
    %25 = vector.broadcast %24 : vector<4x1xf32> to vector<4x128xf32>
    %26 = vector.broadcast %5 : vector<1x128xf32> to vector<4x128xf32>
    %27 = arith.mulf %25, %26 : vector<4x128xf32>
    %28 = arith.addf %18, %27 : vector<4x128xf32>
    %29 = vector.broadcast %9 : vector<1x128xf32> to vector<4x128xf32>
    %30 = arith.mulf %0, %29 : vector<4x128xf32>
    %cst_9 = arith.constant dense<0.000000e+00> : vector<4xf32>
    %31 = vector.multi_reduction <add>, %30, %cst_9 [1] : vector<4x128xf32> to vector<4xf32>
    %32 = vector.shape_cast %31 : vector<4xf32> to vector<4x1xf32>
    %cst_10 = arith.constant 3.125000e-02 : f32
    %33 = vector.broadcast %cst_10 : f32 to vector<4x1xf32>
    %34 = arith.mulf %32, %33 : vector<4x1xf32>
    %35 = vector.broadcast %34 : vector<4x1xf32> to vector<4x128xf32>
    %36 = vector.broadcast %9 : vector<1x128xf32> to vector<4x128xf32>
    %37 = arith.mulf %35, %36 : vector<4x128xf32>
    %38 = arith.addf %28, %37 : vector<4x128xf32>
    %39 = vector.broadcast %13 : vector<1x128xf32> to vector<4x128xf32>
    %40 = arith.mulf %0, %39 : vector<4x128xf32>
    %cst_11 = arith.constant dense<0.000000e+00> : vector<4xf32>
    %41 = vector.multi_reduction <add>, %40, %cst_11 [1] : vector<4x128xf32> to vector<4xf32>
    %42 = vector.shape_cast %41 : vector<4xf32> to vector<4x1xf32>
    %cst_12 = arith.constant 3.125000e-02 : f32
    %43 = vector.broadcast %cst_12 : f32 to vector<4x1xf32>
    %44 = arith.mulf %42, %43 : vector<4x1xf32>
    %45 = vector.broadcast %44 : vector<4x1xf32> to vector<4x128xf32>
    %46 = vector.broadcast %13 : vector<1x128xf32> to vector<4x128xf32>
    %47 = arith.mulf %45, %46 : vector<4x128xf32>
    %48 = arith.addf %38, %47 : vector<4x128xf32>
    %49 = vector.broadcast %17 : vector<1x128xf32> to vector<4x128xf32>
    %50 = arith.mulf %0, %49 : vector<4x128xf32>
    %cst_13 = arith.constant dense<0.000000e+00> : vector<4xf32>
    %51 = vector.multi_reduction <add>, %50, %cst_13 [1] : vector<4x128xf32> to vector<4xf32>
    %52 = vector.shape_cast %51 : vector<4xf32> to vector<4x1xf32>
    %cst_14 = arith.constant 3.125000e-02 : f32
    %53 = vector.broadcast %cst_14 : f32 to vector<4x1xf32>
    %54 = arith.mulf %52, %53 : vector<4x1xf32>
    %55 = vector.broadcast %54 : vector<4x1xf32> to vector<4x128xf32>
    %56 = vector.broadcast %17 : vector<1x128xf32> to vector<4x128xf32>
    %57 = arith.mulf %55, %56 : vector<4x128xf32>
    %58 = arith.addf %48, %57 : vector<4x128xf32>
    %59 = arith.subf %0, %58 : vector<4x128xf32>
    %60 = arith.mulf %59, %59 : vector<4x128xf32>
    %cst_15 = arith.constant 0.000000e+00 : f32
    %61 = vector.broadcast %cst_15 : f32 to vector<4x128xf32>
    %62 = vector.broadcast %5 : vector<1x128xf32> to vector<4x128xf32>
    %63 = arith.mulf %60, %62 : vector<4x128xf32>
    %cst_16 = arith.constant dense<0.000000e+00> : vector<4xf32>
    %64 = vector.multi_reduction <add>, %63, %cst_16 [1] : vector<4x128xf32> to vector<4xf32>
    %65 = vector.shape_cast %64 : vector<4xf32> to vector<4x1xf32>
    %cst_17 = arith.constant 3.125000e-02 : f32
    %66 = vector.broadcast %cst_17 : f32 to vector<4x1xf32>
    %67 = arith.mulf %65, %66 : vector<4x1xf32>
    %68 = vector.broadcast %67 : vector<4x1xf32> to vector<4x128xf32>
    %69 = vector.broadcast %5 : vector<1x128xf32> to vector<4x128xf32>
    %70 = arith.mulf %68, %69 : vector<4x128xf32>
    %71 = arith.addf %61, %70 : vector<4x128xf32>
    %72 = vector.broadcast %9 : vector<1x128xf32> to vector<4x128xf32>
    %73 = arith.mulf %60, %72 : vector<4x128xf32>
    %cst_18 = arith.constant dense<0.000000e+00> : vector<4xf32>
    %74 = vector.multi_reduction <add>, %73, %cst_18 [1] : vector<4x128xf32> to vector<4xf32>
    %75 = vector.shape_cast %74 : vector<4xf32> to vector<4x1xf32>
    %cst_19 = arith.constant 3.125000e-02 : f32
    %76 = vector.broadcast %cst_19 : f32 to vector<4x1xf32>
    %77 = arith.mulf %75, %76 : vector<4x1xf32>
    %78 = vector.broadcast %77 : vector<4x1xf32> to vector<4x128xf32>
    %79 = vector.broadcast %9 : vector<1x128xf32> to vector<4x128xf32>
    %80 = arith.mulf %78, %79 : vector<4x128xf32>
    %81 = arith.addf %71, %80 : vector<4x128xf32>
    %82 = vector.broadcast %13 : vector<1x128xf32> to vector<4x128xf32>
    %83 = arith.mulf %60, %82 : vector<4x128xf32>
    %cst_20 = arith.constant dense<0.000000e+00> : vector<4xf32>
    %84 = vector.multi_reduction <add>, %83, %cst_20 [1] : vector<4x128xf32> to vector<4xf32>
    %85 = vector.shape_cast %84 : vector<4xf32> to vector<4x1xf32>
    %cst_21 = arith.constant 3.125000e-02 : f32
    %86 = vector.broadcast %cst_21 : f32 to vector<4x1xf32>
    %87 = arith.mulf %85, %86 : vector<4x1xf32>
    %88 = vector.broadcast %87 : vector<4x1xf32> to vector<4x128xf32>
    %89 = vector.broadcast %13 : vector<1x128xf32> to vector<4x128xf32>
    %90 = arith.mulf %88, %89 : vector<4x128xf32>
    %91 = arith.addf %81, %90 : vector<4x128xf32>
    %92 = vector.broadcast %17 : vector<1x128xf32> to vector<4x128xf32>
    %93 = arith.mulf %60, %92 : vector<4x128xf32>
    %cst_22 = arith.constant dense<0.000000e+00> : vector<4xf32>
    %94 = vector.multi_reduction <add>, %93, %cst_22 [1] : vector<4x128xf32> to vector<4xf32>
    %95 = vector.shape_cast %94 : vector<4xf32> to vector<4x1xf32>
    %cst_23 = arith.constant 3.125000e-02 : f32
    %96 = vector.broadcast %cst_23 : f32 to vector<4x1xf32>
    %97 = arith.mulf %95, %96 : vector<4x1xf32>
    %98 = vector.broadcast %97 : vector<4x1xf32> to vector<4x128xf32>
    %99 = vector.broadcast %17 : vector<1x128xf32> to vector<4x128xf32>
    %100 = arith.mulf %98, %99 : vector<4x128xf32>
    %101 = arith.addf %91, %100 : vector<4x128xf32>
    %cst_24 = arith.constant 9.99999996E-13 : f32
    %102 = vector.broadcast %cst_24 : f32 to vector<4x128xf32>
    %103 = arith.addf %101, %102 : vector<4x128xf32>
    %104 = math.rsqrt %103 : vector<4x128xf32>
    %105 = arith.mulf %59, %104 : vector<4x128xf32>
    %c0_25 = arith.constant 0 : index
    %c0_26 = arith.constant 0 : index
    %106 = vector.load %arg2[%c0_25, %c0_26] : memref<1x128xf32, #tpu.memory_space<vmem>>, vector<1x128xf32>
    %c0_27 = arith.constant 0 : index
    %c0_28 = arith.constant 0 : index
    %107 = vector.load %arg3[%c0_27, %c0_28] : memref<1x128xf32, #tpu.memory_space<vmem>>, vector<1x128xf32>
    %108 = vector.broadcast %106 : vector<1x128xf32> to vector<4x128xf32>
    %109 = arith.mulf %108, %105 : vector<4x128xf32>
    %110 = vector.broadcast %107 : vector<1x128xf32> to vector<4x128xf32>
    %111 = arith.addf %109, %110 : vector<4x128xf32>
    %c0_29 = arith.constant 0 : index
    %c0_30 = arith.constant 0 : index
    %112 = vector.load %arg5[%c0_29, %c0_30] : memref<4x128xf32, #tpu.memory_space<vmem>>, vector<4x128xf32>
    tpu.vector_store %arg5[%c0_29, %c0_30], %111 {strides = array<i32>} : memref<4x128xf32, #tpu.memory_space<vmem>>, vector<4x128xf32>,
    return
  }
  func.func @transform_0(%arg0: i32) -> (i32, i32) {
    %c0_i32 = arith.constant 0 : i32
    %c0_i32_0 = arith.constant 0 : i32
    return %arg0, %c0_i32 : i32, i32
  }
  func.func @transform_1(%arg0: i32) -> (i32, i32) {
    %c0_i32 = arith.constant 0 : i32
    %c0_i32_0 = arith.constant 0 : i32
    %c0_i32_1 = arith.constant 0 : i32
    return %c0_i32, %c0_i32_0 : i32, i32
  }
  func.func @transform_2(%arg0: i32) -> (i32, i32) {
    %c0_i32 = arith.constant 0 : i32
    %c0_i32_0 = arith.constant 0 : i32
    %c0_i32_1 = arith.constant 0 : i32
    return %c0_i32, %c0_i32_0 : i32, i32
  }
  func.func @transform_3(%arg0: i32) -> (i32, i32) {
    %c0_i32 = arith.constant 0 : i32
    %c0_i32_0 = arith.constant 0 : i32
    %c0_i32_1 = arith.constant 0 : i32
    return %c0_i32, %c0_i32_0 : i32, i32
  }
  func.func @transform_4(%arg0: i32) -> (i32, i32) {
    %c0_i32 = arith.constant 0 : i32
    %c0_i32_0 = arith.constant 0 : i32
    return %arg0, %c0_i32 : i32, i32
  }
}

</mosaic_0001>

<llo_original>
// kernel: tpu_custom_call.1
$region0: #{tpu_custom_call.1}
  #allocation0 [shape = 'u32[]', space=smem, size = 0x4, offset = 0x4, fixed_abs, tag = 'smem constant byte address 0x4 - core index']
  #allocation1 [shape = 'u32[144,128]{1,0:T(1,128)}', space=vmem, size = 0x12000, scoped, tag = 'internal scratch']
  %s0 = inlined_call_operand.hbm [shape: f32[4,128], index: 0, kind: input, shape index: {}]
  %s1 = inlined_call_operand.vmem [shape: f32[1,128], index: 1, kind: input, shape index: {}]
  %s2 = inlined_call_operand.vmem [shape: f32[1,128], index: 2, kind: input, shape index: {}]
  %s3 = inlined_call_operand.vmem [shape: f32[1,128], index: 3, kind: input, shape index: {}]
  %s4 = inlined_call_operand.hbm [shape: f32[4,128], index: 4, kind: output, shape index: {}]
  %s5 = sld [smem:[#allocation0]]
  $region30: #{tpu_custom_call.1} parent=0
    _
  %s7 = ssub.s32 1, %s5
  %s8 = scalar_select 0, %s7, %s5
  $region1: #{tpu_custom_call.1} parent=0
    #allocation2 [shape = 'u8[2048]{0}', space=vmem, size = 0x800, scoped, tag = 'input window, operand 0, single buffered']
    #allocation3 [shape = 's32[1]{0}', space=sflag, size = 0x4, scoped, tag = 'scoped memory for tpu_custom_call.1']
    #allocation4 [shape = 's32[1]{0}', space=sflag, size = 0x4, scoped, tag = 'scoped memory for tpu_custom_call.1']
    #allocation5 [shape = 'u8[2048]{0}', space=vmem, size = 0x800, scoped, tag = 'output window, operand 0, single buffered']
    %9 = vsyncpa [#allocation3], 0
    %10 = vsyncpa [#allocation4], 0
    // Predicated region
    $region2: #{tpu_custom_call.1} parent=1 // pred_check
      _
    $region3: #{tpu_custom_call.1} parent=1 // pred_check_branch
      %12 = sbr.rel (0) target = $region5
    $region4: #{tpu_custom_call.1} parent=1 // pred_region
      %s14 = ssub.s32 64, 64
      %15 = vsyncadd [#allocation3], %s14
      %s17 = sshll.u32 [#allocation2], 4
      %s18 = int_to_ptr.vmem [resolvable:$true] %s17
      %20 = dma.hbm_to_vmem [thread:$0]  %s0, 64, %s18, [#allocation3]
    $region5: #{tpu_custom_call.1} parent=1 // pred_fallthru
      _
    // Predicated region
    $region6: #{tpu_custom_call.1} parent=1 // pred_check
      _
    $region7: #{tpu_custom_call.1} parent=1 // pred_check_branch
      %22 = sbr.rel (0) target = $region9
    $region8: #{tpu_custom_call.1} parent=1 // pred_region
      _
    $region9: #{tpu_custom_call.1} parent=1 // pred_fallthru
      _
    // Predicated region
    $region10: #{tpu_custom_call.1} parent=1 // pred_check
      _
    $region11: #{tpu_custom_call.1} parent=1 // pred_check_branch
      %24 = sbr.rel (0) target = $region13
    $region12: #{tpu_custom_call.1} parent=1 // pred_region
      _
    $region13: #{tpu_custom_call.1} parent=1 // pred_fallthru
      _
    // Predicated region
    $region14: #{tpu_custom_call.1} parent=1 // pred_check
      _
    $region15: #{tpu_custom_call.1} parent=1 // pred_check_branch
      %26 = sbr.rel (0) target = $region17
    $region16: #{tpu_custom_call.1} parent=1 // pred_region
      _
    $region17: #{tpu_custom_call.1} parent=1 // pred_fallthru
      _
    // Predicated region
    $region18: #{tpu_custom_call.1} parent=1 // pred_check
      _
    $region19: #{tpu_custom_call.1} parent=1 // pred_check_branch
      %28 = sbr.rel (0) target = $region21
    $region20: #{tpu_custom_call.1} parent=1 // pred_region
      %29 = dma.done [#allocation3], 64
    $region21: #{tpu_custom_call.1} parent=1 // pred_fallthru
      _
    %v30 = vld [vmem:[#allocation2] sm:$0xf]
    %v31 = vld [vmem:[%s3] sm:$0x1]
    %vm32 = vcmp.eq.f32.partialorder %v31, 0.0
    %v33 = vsel %vm32, 1, 0
    %v34 = vcvt.s32.f32 %v33
    %vm35 = vcmp.eq.f32.partialorder %v31, 1.0
    %v36 = vsel %vm35, 1, 0
    %v37 = vcvt.s32.f32 %v36
    %vm38 = vcmp.eq.f32.partialorder %v31, 2.0
    %v39 = vsel %vm38, 1, 0
    %v40 = vcvt.s32.f32 %v39
    %vm41 = vcmp.eq.f32.partialorder %v31, 3.0
    %v42 = vsel %vm41, 1, 0
    %v43 = vcvt.s32.f32 %v42
    %v45 = vlaneseq
    %v46 = vshrl.u32 %v45, 7
    %v47 = vsub.s32 0, %v46
    %v48 = vrot.slane %v34, %v47
    %v50 = vmul.f32 %v30, %v48
    %vm51 = vcmask 1043456
    %v52 = vsel %vm51, %v50, 0.0
    %53 = vadd.xlane.f32.xlu0 %v52
    %v54 = vpop.xlane.xlu0 %53
    %v55 = vmul.f32 %v54, 0.03125
    %v56 = vmul.f32 %v55, %v48
    %v57 = vadd.f32 %v56, 0.0
    %v59 = vlaneseq
    %v60 = vshrl.u32 %v59, 7
    %v61 = vsub.s32 0, %v60
    %v62 = vrot.slane %v37, %v61
    %v64 = vmul.f32 %v30, %v62
    %v65 = vsel %vm51, %v64, 0.0
    %66 = vadd.xlane.f32.xlu0 %v65
    %v67 = vpop.xlane.xlu0 %66
    %v68 = vmul.f32 %v67, 0.03125
    %v69 = vmul.f32 %v68, %v62
    %v70 = vadd.f32 %v57, %v69
    %v72 = vlaneseq
    %v73 = vshrl.u32 %v72, 7
    %v74 = vsub.s32 0, %v73
    %v75 = vrot.slane %v40, %v74
    %v77 = vmul.f32 %v30, %v75
    %v78 = vsel %vm51, %v77, 0.0
    %79 = vadd.xlane.f32.xlu0 %v78
    %v80 = vpop.xlane.xlu0 %79
    %v81 = vmul.f32 %v80, 0.03125
    %v82 = vmul.f32 %v81, %v75
    %v83 = vadd.f32 %v70, %v82
    %v85 = vlaneseq
    %v86 = vshrl.u32 %v85, 7
    %v87 = vsub.s32 0, %v86
    %v88 = vrot.slane %v43, %v87
    %v90 = vmul.f32 %v30, %v88
    %v91 = vsel %vm51, %v90, 0.0
    %92 = vadd.xlane.f32.xlu0 %v91
    %v93 = vpop.xlane.xlu0 %92
    %v94 = vmul.f32 %v93, 0.03125
    %v95 = vmul.f32 %v94, %v88
    %v96 = vadd.f32 %v83, %v95
    %v97 = vsub.f32 %v30, %v96
    %v98 = vmul.f32 %v97, %v97
    %v99 = vmul.f32 %v98, %v48
    %v100 = vsel %vm51, %v99, 0.0
    %101 = vadd.xlane.f32.xlu0 %v100
    %v102 = vpop.xlane.xlu0 %101
    %v103 = vmul.f32 %v102, 0.03125
    %v104 = vmul.f32 %v103, %v48
    %v105 = vadd.f32 %v104, 0.0
    %v106 = vmul.f32 %v98, %v62
    %v107 = vsel %vm51, %v106, 0.0
    %108 = vadd.xlane.f32.xlu0 %v107
    %v109 = vpop.xlane.xlu0 %108
    %v110 = vmul.f32 %v109, 0.03125
    %v111 = vmul.f32 %v110, %v62
    %v112 = vadd.f32 %v105, %v111
    %v113 = vmul.f32 %v98, %v75
    %v114 = vsel %vm51, %v113, 0.0
    %115 = vadd.xlane.f32.xlu0 %v114
    %v116 = vpop.xlane.xlu0 %115
    %v117 = vmul.f32 %v116, 0.03125
    %v118 = vmul.f32 %v117, %v75
    %v119 = vadd.f32 %v112, %v118
    %v120 = vmul.f32 %v98, %v88
    %v121 = vsel %vm51, %v120, 0.0
    %122 = vadd.xlane.f32.xlu0 %v121
    %v123 = vpop.xlane.xlu0 %122
    %v124 = vmul.f32 %v123, 0.03125
    %v125 = vmul.f32 %v124, %v88
    %v126 = vadd.f32 %v119, %v125
    %v127 = vadd.f32 %v126, 1e-12
    %v128 = vrsqrt.pop %v127
    %v129 = vmul.f32 %v97, %v128
    %v130 = vld [vmem:[%s1] sm:$0x1]
    %v131 = vld [vmem:[%s2] sm:$0x1]
    %v133 = vlaneseq
    %v134 = vshrl.u32 %v133, 7
    %v135 = vsub.s32 0, %v134
    %v136 = vrot.slane %v130, %v135
    %v138 = vmul.f32 %v136, %v129
    %v140 = vlaneseq
    %v141 = vshrl.u32 %v140, 7
    %v142 = vsub.s32 0, %v141
    %v143 = vrot.slane %v131, %v142
    %v145 = vadd.f32 %v138, %v143
    %146 = vst [vmem:[#allocation5] sm:$0xf] %v145
    // Predicated region
    $region22: #{tpu_custom_call.1} parent=1 // pred_check
      _
    $region23: #{tpu_custom_call.1} parent=1 // pred_check_branch
      %148 = sbr.rel (0) target = $region25
    $region24: #{tpu_custom_call.1} parent=1 // pred_region
      %s150 = ssub.s32 64, 64
      %151 = vsyncadd [#allocation4], %s150
      %s153 = sshll.u32 [#allocation5], 4
      %s154 = int_to_ptr.vmem [resolvable:$true] %s153
      %156 = dma.vmem_to_hbm [thread:$0]  %s154, 64, %s4, [#allocation4]
    $region25: #{tpu_custom_call.1} parent=1 // pred_fallthru
      _
    // Predicated region
    $region26: #{tpu_custom_call.1} parent=1 // pred_check
      _
    $region27: #{tpu_custom_call.1} parent=1 // pred_check_branch
      %158 = sbr.rel (0) target = $region29
    $region28: #{tpu_custom_call.1} parent=1 // pred_region
      %159 = dma.done [#allocation4], 64
    $region29: #{tpu_custom_call.1} parent=1 // pred_fallthru
      _
    %160 = vsyncpa [#allocation3], 1
    %161 = vsyncpa [#allocation4], 1

</llo_original>
